<compile_context>
chip_gen: v6e
topology: v6e:2x2x1
jax: 0.10.0
libtpu: 0.0.40
codegen_flags: <defaults>
</compile_context>

<pallas_src>
import functools

import jax
import jax.numpy as jnp
from jax import lax
from jax.experimental import pallas as pl
from jax.experimental.pallas import tpu as pltpu

_REPR_DIM = 256
_N_SUM = 12  # Irwin–Hall draws per element: mean _N_SUM/2, variance _N_SUM/12 = 1


def _irwin_hall_normal_kernel(bits_ref, out_ref):
    """bits_ref: VMEM int32[_N_SUM, R, D] raw random bits.
       out_ref:  VMEM f32[R, D] approx standard-normal samples.
    """
    mask = jnp.int32((1 << 23) - 1)          # keep low 23 bits -> uniform int in [0, 2^23)
    inv = jnp.float32(1.0 / (1 << 23))       # -> uniform float in [0, 1)
    acc = jnp.zeros(out_ref.shape, jnp.float32)
    # Static unroll: 12 convert+add passes, all on the 4-wide VALU slots (no EUP).
    for i in range(_N_SUM):
        u = (bits_ref[i] & mask).astype(jnp.float32) * inv
        acc = acc + u
    out_ref[...] = acc - jnp.float32(_N_SUM * 0.5)


@functools.partial(jax.jit, static_argnums=(1, 2))
def _pallas_randn(key, rows, repr_dim):
    # Pad sublane axis to a multiple of 8 so the single output block is an exact
    # (8, 128) tiling (unmasked vst); lane axis (256) is already 2 full vregs.
    rows_pad = ((rows + 7) // 8) * 8
    bits = jax.random.bits(key, (_N_SUM, rows_pad, repr_dim), dtype=jnp.uint32)
    bits = lax.bitcast_convert_type(bits, jnp.int32)  # signed view; kernel masks low bits
    flat = pl.pallas_call(
        _irwin_hall_normal_kernel,
        out_shape=jax.ShapeDtypeStruct((rows_pad, repr_dim), jnp.float32),
        # Grid-less single block: at B*T*D*4 B = 16 KiB the kernel is dominated by
        # fixed launch overhead; tiling/pipelining would only add serial grid steps.
        in_specs=[pl.BlockSpec(memory_space=pltpu.MemorySpace.VMEM)],
        out_specs=pl.BlockSpec(memory_space=pltpu.MemorySpace.VMEM),
    )(bits)
    return flat[:rows]


class MockModel:
    """JAX/Pallas port of the PyTorch MockModel (no parameters)."""

    def __init__(self, bs: int = 2, n_steps: int = 8, output_dim: int = 256, seed: int = 0):
        self.bs = bs
        self.n_steps = n_steps
        # The reference module hard-codes repr_dim = 256 regardless of output_dim.
        self.repr_dim = _REPR_DIM
        self._base_key = jax.random.PRNGKey(seed)
        self._call_count = 0

    def __call__(self, states, actions, key=None):
        # states: [B, T, Ch, H, W], actions: [B, T-1, 2] — ignored, exactly like the
        # reference forward().
        del states, actions
        if key is None:
            # Mimic torch.randn advancing global RNG state: fresh noise every call.
            key = jax.random.fold_in(self._base_key, self._call_count)
            self._call_count += 1
        flat = _pallas_randn(key, self.bs * self.n_steps, self.repr_dim)
        return flat.reshape(self.bs, self.n_steps, self.repr_dim)


if __name__ == "__main__":
    key = jax.random.PRNGKey(0)
    B, T, C, H, W = 2, 8, 4, 16, 16  # small shapes consistent with the forward signature
    k_states, k_actions = jax.random.split(key)
    states = jax.random.normal(k_states, (B, T, C, H, W), dtype=jnp.float32)
    actions = jax.random.normal(k_actions, (B, T - 1, 2), dtype=jnp.float32)

    model = MockModel(bs=B, n_steps=T)
    preds = model(states, actions)
    preds = jax.block_until_ready(preds)

    assert preds.shape == (B, T, 256), preds.shape
    assert preds.dtype == jnp.float32, preds.dtype
    # sanity: samples look like a standard normal (loose bounds, smoke check)
    assert bool(jnp.isfinite(preds).all())
    assert abs(float(preds.mean())) < 0.2
    assert 0.7 < float(preds.std()) < 1.3

    # repeated calls produce fresh (different) noise, like torch.randn
    preds2 = jax.block_until_ready(model(states, actions))
    assert not bool(jnp.array_equal(preds, preds2))

    print("KERNEL_OK")
</pallas_src>

<mosaic_0001>
module attributes {stable_mosaic.version = 11 : i64} {
  func.func @_irwin_hall_normal_kernel(%arg0: memref<12x16x256xi32, #tpu.memory_space<vmem>>, %arg1: memref<16x256xf32, #tpu.memory_space<vmem>>) attributes {dimension_semantics = [], scalar_prefetch = 0 : i64, scratch_operands = 0 : i64, tpu.core_type = #tpu.core_type<tc>} {
    %cst = arith.constant 0.000000e+00 : f32
    %0 = vector.broadcast %cst : f32 to vector<16x256xf32>
    %c0 = arith.constant 0 : index
    %c0_0 = arith.constant 0 : index
    %c0_1 = arith.constant 0 : index
    %1 = vector.load %arg0[%c0, %c0_0, %c0_1] : memref<12x16x256xi32, #tpu.memory_space<vmem>>, vector<1x16x256xi32>
    %2 = vector.shape_cast %1 : vector<1x16x256xi32> to vector<16x256xi32>
    %c8388607_i32 = arith.constant 8388607 : i32
    %3 = vector.broadcast %c8388607_i32 : i32 to vector<16x256xi32>
    %4 = arith.andi %2, %3 : vector<16x256xi32>
    %5 = arith.sitofp %4 : vector<16x256xi32> to vector<16x256xf32>
    %cst_2 = arith.constant 1.1920929E-7 : f32
    %6 = vector.broadcast %cst_2 : f32 to vector<16x256xf32>
    %7 = arith.mulf %5, %6 : vector<16x256xf32>
    %8 = arith.addf %0, %7 : vector<16x256xf32>
    %c1 = arith.constant 1 : index
    %c0_3 = arith.constant 0 : index
    %c0_4 = arith.constant 0 : index
    %9 = vector.load %arg0[%c1, %c0_3, %c0_4] : memref<12x16x256xi32, #tpu.memory_space<vmem>>, vector<1x16x256xi32>
    %10 = vector.shape_cast %9 : vector<1x16x256xi32> to vector<16x256xi32>
    %c8388607_i32_5 = arith.constant 8388607 : i32
    %11 = vector.broadcast %c8388607_i32_5 : i32 to vector<16x256xi32>
    %12 = arith.andi %10, %11 : vector<16x256xi32>
    %13 = arith.sitofp %12 : vector<16x256xi32> to vector<16x256xf32>
    %cst_6 = arith.constant 1.1920929E-7 : f32
    %14 = vector.broadcast %cst_6 : f32 to vector<16x256xf32>
    %15 = arith.mulf %13, %14 : vector<16x256xf32>
    %16 = arith.addf %8, %15 : vector<16x256xf32>
    %c2 = arith.constant 2 : index
    %c0_7 = arith.constant 0 : index
    %c0_8 = arith.constant 0 : index
    %17 = vector.load %arg0[%c2, %c0_7, %c0_8] : memref<12x16x256xi32, #tpu.memory_space<vmem>>, vector<1x16x256xi32>
    %18 = vector.shape_cast %17 : vector<1x16x256xi32> to vector<16x256xi32>
    %c8388607_i32_9 = arith.constant 8388607 : i32
    %19 = vector.broadcast %c8388607_i32_9 : i32 to vector<16x256xi32>
    %20 = arith.andi %18, %19 : vector<16x256xi32>
    %21 = arith.sitofp %20 : vector<16x256xi32> to vector<16x256xf32>
    %cst_10 = arith.constant 1.1920929E-7 : f32
    %22 = vector.broadcast %cst_10 : f32 to vector<16x256xf32>
    %23 = arith.mulf %21, %22 : vector<16x256xf32>
    %24 = arith.addf %16, %23 : vector<16x256xf32>
    %c3 = arith.constant 3 : index
    %c0_11 = arith.constant 0 : index
    %c0_12 = arith.constant 0 : index
    %25 = vector.load %arg0[%c3, %c0_11, %c0_12] : memref<12x16x256xi32, #tpu.memory_space<vmem>>, vector<1x16x256xi32>
    %26 = vector.shape_cast %25 : vector<1x16x256xi32> to vector<16x256xi32>
    %c8388607_i32_13 = arith.constant 8388607 : i32
    %27 = vector.broadcast %c8388607_i32_13 : i32 to vector<16x256xi32>
    %28 = arith.andi %26, %27 : vector<16x256xi32>
    %29 = arith.sitofp %28 : vector<16x256xi32> to vector<16x256xf32>
    %cst_14 = arith.constant 1.1920929E-7 : f32
    %30 = vector.broadcast %cst_14 : f32 to vector<16x256xf32>
    %31 = arith.mulf %29, %30 : vector<16x256xf32>
    %32 = arith.addf %24, %31 : vector<16x256xf32>
    %c4 = arith.constant 4 : index
    %c0_15 = arith.constant 0 : index
    %c0_16 = arith.constant 0 : index
    %33 = vector.load %arg0[%c4, %c0_15, %c0_16] : memref<12x16x256xi32, #tpu.memory_space<vmem>>, vector<1x16x256xi32>
    %34 = vector.shape_cast %33 : vector<1x16x256xi32> to vector<16x256xi32>
    %c8388607_i32_17 = arith.constant 8388607 : i32
    %35 = vector.broadcast %c8388607_i32_17 : i32 to vector<16x256xi32>
    %36 = arith.andi %34, %35 : vector<16x256xi32>
    %37 = arith.sitofp %36 : vector<16x256xi32> to vector<16x256xf32>
    %cst_18 = arith.constant 1.1920929E-7 : f32
    %38 = vector.broadcast %cst_18 : f32 to vector<16x256xf32>
    %39 = arith.mulf %37, %38 : vector<16x256xf32>
    %40 = arith.addf %32, %39 : vector<16x256xf32>
    %c5 = arith.constant 5 : index
    %c0_19 = arith.constant 0 : index
    %c0_20 = arith.constant 0 : index
    %41 = vector.load %arg0[%c5, %c0_19, %c0_20] : memref<12x16x256xi32, #tpu.memory_space<vmem>>, vector<1x16x256xi32>
    %42 = vector.shape_cast %41 : vector<1x16x256xi32> to vector<16x256xi32>
    %c8388607_i32_21 = arith.constant 8388607 : i32
    %43 = vector.broadcast %c8388607_i32_21 : i32 to vector<16x256xi32>
    %44 = arith.andi %42, %43 : vector<16x256xi32>
    %45 = arith.sitofp %44 : vector<16x256xi32> to vector<16x256xf32>
    %cst_22 = arith.constant 1.1920929E-7 : f32
    %46 = vector.broadcast %cst_22 : f32 to vector<16x256xf32>
    %47 = arith.mulf %45, %46 : vector<16x256xf32>
    %48 = arith.addf %40, %47 : vector<16x256xf32>
    %c6 = arith.constant 6 : index
    %c0_23 = arith.constant 0 : index
    %c0_24 = arith.constant 0 : index
    %49 = vector.load %arg0[%c6, %c0_23, %c0_24] : memref<12x16x256xi32, #tpu.memory_space<vmem>>, vector<1x16x256xi32>
    %50 = vector.shape_cast %49 : vector<1x16x256xi32> to vector<16x256xi32>
    %c8388607_i32_25 = arith.constant 8388607 : i32
    %51 = vector.broadcast %c8388607_i32_25 : i32 to vector<16x256xi32>
    %52 = arith.andi %50, %51 : vector<16x256xi32>
    %53 = arith.sitofp %52 : vector<16x256xi32> to vector<16x256xf32>
    %cst_26 = arith.constant 1.1920929E-7 : f32
    %54 = vector.broadcast %cst_26 : f32 to vector<16x256xf32>
    %55 = arith.mulf %53, %54 : vector<16x256xf32>
    %56 = arith.addf %48, %55 : vector<16x256xf32>
    %c7 = arith.constant 7 : index
    %c0_27 = arith.constant 0 : index
    %c0_28 = arith.constant 0 : index
    %57 = vector.load %arg0[%c7, %c0_27, %c0_28] : memref<12x16x256xi32, #tpu.memory_space<vmem>>, vector<1x16x256xi32>
    %58 = vector.shape_cast %57 : vector<1x16x256xi32> to vector<16x256xi32>
    %c8388607_i32_29 = arith.constant 8388607 : i32
    %59 = vector.broadcast %c8388607_i32_29 : i32 to vector<16x256xi32>
    %60 = arith.andi %58, %59 : vector<16x256xi32>
    %61 = arith.sitofp %60 : vector<16x256xi32> to vector<16x256xf32>
    %cst_30 = arith.constant 1.1920929E-7 : f32
    %62 = vector.broadcast %cst_30 : f32 to vector<16x256xf32>
    %63 = arith.mulf %61, %62 : vector<16x256xf32>
    %64 = arith.addf %56, %63 : vector<16x256xf32>
    %c8 = arith.constant 8 : index
    %c0_31 = arith.constant 0 : index
    %c0_32 = arith.constant 0 : index
    %65 = vector.load %arg0[%c8, %c0_31, %c0_32] : memref<12x16x256xi32, #tpu.memory_space<vmem>>, vector<1x16x256xi32>
    %66 = vector.shape_cast %65 : vector<1x16x256xi32> to vector<16x256xi32>
    %c8388607_i32_33 = arith.constant 8388607 : i32
    %67 = vector.broadcast %c8388607_i32_33 : i32 to vector<16x256xi32>
    %68 = arith.andi %66, %67 : vector<16x256xi32>
    %69 = arith.sitofp %68 : vector<16x256xi32> to vector<16x256xf32>
    %cst_34 = arith.constant 1.1920929E-7 : f32
    %70 = vector.broadcast %cst_34 : f32 to vector<16x256xf32>
    %71 = arith.mulf %69, %70 : vector<16x256xf32>
    %72 = arith.addf %64, %71 : vector<16x256xf32>
    %c9 = arith.constant 9 : index
    %c0_35 = arith.constant 0 : index
    %c0_36 = arith.constant 0 : index
    %73 = vector.load %arg0[%c9, %c0_35, %c0_36] : memref<12x16x256xi32, #tpu.memory_space<vmem>>, vector<1x16x256xi32>
    %74 = vector.shape_cast %73 : vector<1x16x256xi32> to vector<16x256xi32>
    %c8388607_i32_37 = arith.constant 8388607 : i32
    %75 = vector.broadcast %c8388607_i32_37 : i32 to vector<16x256xi32>
    %76 = arith.andi %74, %75 : vector<16x256xi32>
    %77 = arith.sitofp %76 : vector<16x256xi32> to vector<16x256xf32>
    %cst_38 = arith.constant 1.1920929E-7 : f32
    %78 = vector.broadcast %cst_38 : f32 to vector<16x256xf32>
    %79 = arith.mulf %77, %78 : vector<16x256xf32>
    %80 = arith.addf %72, %79 : vector<16x256xf32>
    %c10 = arith.constant 10 : index
    %c0_39 = arith.constant 0 : index
    %c0_40 = arith.constant 0 : index
    %81 = vector.load %arg0[%c10, %c0_39, %c0_40] : memref<12x16x256xi32, #tpu.memory_space<vmem>>, vector<1x16x256xi32>
    %82 = vector.shape_cast %81 : vector<1x16x256xi32> to vector<16x256xi32>
    %c8388607_i32_41 = arith.constant 8388607 : i32
    %83 = vector.broadcast %c8388607_i32_41 : i32 to vector<16x256xi32>
    %84 = arith.andi %82, %83 : vector<16x256xi32>
    %85 = arith.sitofp %84 : vector<16x256xi32> to vector<16x256xf32>
    %cst_42 = arith.constant 1.1920929E-7 : f32
    %86 = vector.broadcast %cst_42 : f32 to vector<16x256xf32>
    %87 = arith.mulf %85, %86 : vector<16x256xf32>
    %88 = arith.addf %80, %87 : vector<16x256xf32>
    %c11 = arith.constant 11 : index
    %c0_43 = arith.constant 0 : index
    %c0_44 = arith.constant 0 : index
    %89 = vector.load %arg0[%c11, %c0_43, %c0_44] : memref<12x16x256xi32, #tpu.memory_space<vmem>>, vector<1x16x256xi32>
    %90 = vector.shape_cast %89 : vector<1x16x256xi32> to vector<16x256xi32>
    %c8388607_i32_45 = arith.constant 8388607 : i32
    %91 = vector.broadcast %c8388607_i32_45 : i32 to vector<16x256xi32>
    %92 = arith.andi %90, %91 : vector<16x256xi32>
    %93 = arith.sitofp %92 : vector<16x256xi32> to vector<16x256xf32>
    %cst_46 = arith.constant 1.1920929E-7 : f32
    %94 = vector.broadcast %cst_46 : f32 to vector<16x256xf32>
    %95 = arith.mulf %93, %94 : vector<16x256xf32>
    %96 = arith.addf %88, %95 : vector<16x256xf32>
    %cst_47 = arith.constant 6.000000e+00 : f32
    %97 = vector.broadcast %cst_47 : f32 to vector<16x256xf32>
    %98 = arith.subf %96, %97 : vector<16x256xf32>
    %c0_48 = arith.constant 0 : index
    %c0_49 = arith.constant 0 : index
    %99 = vector.load %arg1[%c0_48, %c0_49] : memref<16x256xf32, #tpu.memory_space<vmem>>, vector<16x256xf32>
    tpu.vector_store %arg1[%c0_48, %c0_49], %98 {strides = array<i32>} : memref<16x256xf32, #tpu.memory_space<vmem>>, vector<16x256xf32>,
    return
  }
}

</mosaic_0001>

<llo_original>
// kernel: _pallas_randn.1
$region0: #{_pallas_randn.1}
  #allocation0 [shape = 'u32[]', space=smem, size = 0x4, offset = 0x4, fixed_abs, tag = 'smem constant byte address 0x4 - core index']
  #allocation1 [shape = 'u32[144,128]{1,0:T(1,128)}', space=vmem, size = 0x12000, scoped, tag = 'internal scratch']
  %s0 = inlined_call_operand.vmem [shape: s32[12,16,256], index: 0, kind: input, shape index: {}]
  %s1 = inlined_call_operand.hbm [shape: f32[16,256], index: 1, kind: output, shape index: {}]
  %s2 = sld [smem:[#allocation0]]
  $region14: #{_pallas_randn.1} parent=0
    _
  %s4 = ssub.s32 1, %s2
  %s5 = scalar_select 0, %s4, %s2
  $region1: #{_pallas_randn.1} parent=0
    #allocation2 [shape = 'u8[16384]{0}', space=vmem, size = 0x4000, scoped, tag = 'output window, operand 0, single buffered']
    #allocation3 [shape = 's32[1]{0}', space=sflag, size = 0x4, scoped, tag = 'scoped memory for _pallas_randn.1']
    %6 = vsyncpa [#allocation3], 0
    // Predicated region
    $region2: #{_pallas_randn.1} parent=1 // pred_check
      _
    $region3: #{_pallas_randn.1} parent=1 // pred_check_branch
      %8 = sbr.rel (0) target = $region5
    $region4: #{_pallas_randn.1} parent=1 // pred_region
      _
    $region5: #{_pallas_randn.1} parent=1 // pred_fallthru
      _
    %v9 = vld [vmem:[%s0] sm:$0xff]
    %v10 = vld [vmem:[%s0 + $0x8] sm:$0xff]
    %v11 = vld [vmem:[%s0 + $0x10] sm:$0xff]
    %v12 = vld [vmem:[%s0 + $0x18] sm:$0xff]
    %v13 = vand.u32 %v9, 8388607
    %v14 = vand.u32 %v10, 8388607
    %v15 = vand.u32 %v11, 8388607
    %v16 = vand.u32 %v12, 8388607
    %v17 = vcvt.s32.f32 %v13
    %v18 = vcvt.s32.f32 %v14
    %v19 = vcvt.s32.f32 %v15
    %v20 = vcvt.s32.f32 %v16
    %v21 = vmul.f32 %v17, 1.1920929e-07
    %v22 = vmul.f32 %v18, 1.1920929e-07
    %v23 = vmul.f32 %v19, 1.1920929e-07
    %v24 = vmul.f32 %v20, 1.1920929e-07
    %v25 = vadd.f32 %v21, 0.0
    %v26 = vadd.f32 %v22, 0.0
    %v27 = vadd.f32 %v23, 0.0
    %v28 = vadd.f32 %v24, 0.0
    %s29 = scalar_lea.vmem %s0, 32
    %v30 = vld [vmem:[%s29] sm:$0xff]
    %v31 = vld [vmem:[%s29 + $0x8] sm:$0xff]
    %v32 = vld [vmem:[%s29 + $0x10] sm:$0xff]
    %v33 = vld [vmem:[%s29 + $0x18] sm:$0xff]
    %v34 = vand.u32 %v30, 8388607
    %v35 = vand.u32 %v31, 8388607
    %v36 = vand.u32 %v32, 8388607
    %v37 = vand.u32 %v33, 8388607
    %v38 = vcvt.s32.f32 %v34
    %v39 = vcvt.s32.f32 %v35
    %v40 = vcvt.s32.f32 %v36
    %v41 = vcvt.s32.f32 %v37
    %v42 = vmul.f32 %v38, 1.1920929e-07
    %v43 = vmul.f32 %v39, 1.1920929e-07
    %v44 = vmul.f32 %v40, 1.1920929e-07
    %v45 = vmul.f32 %v41, 1.1920929e-07
    %v46 = vadd.f32 %v25, %v42
    %v47 = vadd.f32 %v26, %v43
    %v48 = vadd.f32 %v27, %v44
    %v49 = vadd.f32 %v28, %v45
    %s50 = scalar_lea.vmem %s0, 64
    %v51 = vld [vmem:[%s50] sm:$0xff]
    %v52 = vld [vmem:[%s50 + $0x8] sm:$0xff]
    %v53 = vld [vmem:[%s50 + $0x10] sm:$0xff]
    %v54 = vld [vmem:[%s50 + $0x18] sm:$0xff]
    %v55 = vand.u32 %v51, 8388607
    %v56 = vand.u32 %v52, 8388607
    %v57 = vand.u32 %v53, 8388607
    %v58 = vand.u32 %v54, 8388607
    %v59 = vcvt.s32.f32 %v55
    %v60 = vcvt.s32.f32 %v56
    %v61 = vcvt.s32.f32 %v57
    %v62 = vcvt.s32.f32 %v58
    %v63 = vmul.f32 %v59, 1.1920929e-07
    %v64 = vmul.f32 %v60, 1.1920929e-07
    %v65 = vmul.f32 %v61, 1.1920929e-07
    %v66 = vmul.f32 %v62, 1.1920929e-07
    %v67 = vadd.f32 %v46, %v63
    %v68 = vadd.f32 %v47, %v64
    %v69 = vadd.f32 %v48, %v65
    %v70 = vadd.f32 %v49, %v66
    %s71 = scalar_lea.vmem %s0, 96
    %v72 = vld [vmem:[%s71] sm:$0xff]
    %v73 = vld [vmem:[%s71 + $0x8] sm:$0xff]
    %v74 = vld [vmem:[%s71 + $0x10] sm:$0xff]
    %v75 = vld [vmem:[%s71 + $0x18] sm:$0xff]
    %v76 = vand.u32 %v72, 8388607
    %v77 = vand.u32 %v73, 8388607
    %v78 = vand.u32 %v74, 8388607
    %v79 = vand.u32 %v75, 8388607
    %v80 = vcvt.s32.f32 %v76
    %v81 = vcvt.s32.f32 %v77
    %v82 = vcvt.s32.f32 %v78
    %v83 = vcvt.s32.f32 %v79
    %v84 = vmul.f32 %v80, 1.1920929e-07
    %v85 = vmul.f32 %v81, 1.1920929e-07
    %v86 = vmul.f32 %v82, 1.1920929e-07
    %v87 = vmul.f32 %v83, 1.1920929e-07
    %v88 = vadd.f32 %v67, %v84
    %v89 = vadd.f32 %v68, %v85
    %v90 = vadd.f32 %v69, %v86
    %v91 = vadd.f32 %v70, %v87
    %s92 = scalar_lea.vmem %s0, 128
    %v93 = vld [vmem:[%s92] sm:$0xff]
    %v94 = vld [vmem:[%s92 + $0x8] sm:$0xff]
    %v95 = vld [vmem:[%s92 + $0x10] sm:$0xff]
    %v96 = vld [vmem:[%s92 + $0x18] sm:$0xff]
    %v97 = vand.u32 %v93, 8388607
    %v98 = vand.u32 %v94, 8388607
    %v99 = vand.u32 %v95, 8388607
    %v100 = vand.u32 %v96, 8388607
    %v101 = vcvt.s32.f32 %v97
    %v102 = vcvt.s32.f32 %v98
    %v103 = vcvt.s32.f32 %v99
    %v104 = vcvt.s32.f32 %v100
    %v105 = vmul.f32 %v101, 1.1920929e-07
    %v106 = vmul.f32 %v102, 1.1920929e-07
    %v107 = vmul.f32 %v103, 1.1920929e-07
    %v108 = vmul.f32 %v104, 1.1920929e-07
    %v109 = vadd.f32 %v88, %v105
    %v110 = vadd.f32 %v89, %v106
    %v111 = vadd.f32 %v90, %v107
    %v112 = vadd.f32 %v91, %v108
    %s113 = scalar_lea.vmem %s0, 160
    %v114 = vld [vmem:[%s113] sm:$0xff]
    %v115 = vld [vmem:[%s113 + $0x8] sm:$0xff]
    %v116 = vld [vmem:[%s113 + $0x10] sm:$0xff]
    %v117 = vld [vmem:[%s113 + $0x18] sm:$0xff]
    %v118 = vand.u32 %v114, 8388607
    %v119 = vand.u32 %v115, 8388607
    %v120 = vand.u32 %v116, 8388607
    %v121 = vand.u32 %v117, 8388607
    %v122 = vcvt.s32.f32 %v118
    %v123 = vcvt.s32.f32 %v119
    %v124 = vcvt.s32.f32 %v120
    %v125 = vcvt.s32.f32 %v121
    %v126 = vmul.f32 %v122, 1.1920929e-07
    %v127 = vmul.f32 %v123, 1.1920929e-07
    %v128 = vmul.f32 %v124, 1.1920929e-07
    %v129 = vmul.f32 %v125, 1.1920929e-07
    %v130 = vadd.f32 %v109, %v126
    %v131 = vadd.f32 %v110, %v127
    %v132 = vadd.f32 %v111, %v128
    %v133 = vadd.f32 %v112, %v129
    %s134 = scalar_lea.vmem %s0, 192
    %v135 = vld [vmem:[%s134] sm:$0xff]
    %v136 = vld [vmem:[%s134 + $0x8] sm:$0xff]
    %v137 = vld [vmem:[%s134 + $0x10] sm:$0xff]
    %v138 = vld [vmem:[%s134 + $0x18] sm:$0xff]
    %v139 = vand.u32 %v135, 8388607
    %v140 = vand.u32 %v136, 8388607
    %v141 = vand.u32 %v137, 8388607
    %v142 = vand.u32 %v138, 8388607
    %v143 = vcvt.s32.f32 %v139
    %v144 = vcvt.s32.f32 %v140
    %v145 = vcvt.s32.f32 %v141
    %v146 = vcvt.s32.f32 %v142
    %v147 = vmul.f32 %v143, 1.1920929e-07
    %v148 = vmul.f32 %v144, 1.1920929e-07
    %v149 = vmul.f32 %v145, 1.1920929e-07
    %v150 = vmul.f32 %v146, 1.1920929e-07
    %v151 = vadd.f32 %v130, %v147
    %v152 = vadd.f32 %v131, %v148
    %v153 = vadd.f32 %v132, %v149
    %v154 = vadd.f32 %v133, %v150
    %s155 = scalar_lea.vmem %s0, 224
    %v156 = vld [vmem:[%s155] sm:$0xff]
    %v157 = vld [vmem:[%s155 + $0x8] sm:$0xff]
    %v158 = vld [vmem:[%s155 + $0x10] sm:$0xff]
    %v159 = vld [vmem:[%s155 + $0x18] sm:$0xff]
    %v160 = vand.u32 %v156, 8388607
    %v161 = vand.u32 %v157, 8388607
    %v162 = vand.u32 %v158, 8388607
    %v163 = vand.u32 %v159, 8388607
    %v164 = vcvt.s32.f32 %v160
    %v165 = vcvt.s32.f32 %v161
    %v166 = vcvt.s32.f32 %v162
    %v167 = vcvt.s32.f32 %v163
    %v168 = vmul.f32 %v164, 1.1920929e-07
    %v169 = vmul.f32 %v165, 1.1920929e-07
    %v170 = vmul.f32 %v166, 1.1920929e-07
    %v171 = vmul.f32 %v167, 1.1920929e-07
    %v172 = vadd.f32 %v151, %v168
    %v173 = vadd.f32 %v152, %v169
    %v174 = vadd.f32 %v153, %v170
    %v175 = vadd.f32 %v154, %v171
    %s176 = scalar_lea.vmem %s0, 256
    %v177 = vld [vmem:[%s176] sm:$0xff]
    %v178 = vld [vmem:[%s176 + $0x8] sm:$0xff]
    %v179 = vld [vmem:[%s176 + $0x10] sm:$0xff]
    %v180 = vld [vmem:[%s176 + $0x18] sm:$0xff]
    %v181 = vand.u32 %v177, 8388607
    %v182 = vand.u32 %v178, 8388607
    %v183 = vand.u32 %v179, 8388607
    %v184 = vand.u32 %v180, 8388607
    %v185 = vcvt.s32.f32 %v181
    %v186 = vcvt.s32.f32 %v182
    %v187 = vcvt.s32.f32 %v183
    %v188 = vcvt.s32.f32 %v184
    %v189 = vmul.f32 %v185, 1.1920929e-07
    %v190 = vmul.f32 %v186, 1.1920929e-07
    %v191 = vmul.f32 %v187, 1.1920929e-07
    %v192 = vmul.f32 %v188, 1.1920929e-07
    %v193 = vadd.f32 %v172, %v189
    %v194 = vadd.f32 %v173, %v190
    %v195 = vadd.f32 %v174, %v191
    %v196 = vadd.f32 %v175, %v192
    %s197 = scalar_lea.vmem %s0, 288
    %v198 = vld [vmem:[%s197] sm:$0xff]
    %v199 = vld [vmem:[%s197 + $0x8] sm:$0xff]
    %v200 = vld [vmem:[%s197 + $0x10] sm:$0xff]
    %v201 = vld [vmem:[%s197 + $0x18] sm:$0xff]
    %v202 = vand.u32 %v198, 8388607
    %v203 = vand.u32 %v199, 8388607
    %v204 = vand.u32 %v200, 8388607
    %v205 = vand.u32 %v201, 8388607
    %v206 = vcvt.s32.f32 %v202
    %v207 = vcvt.s32.f32 %v203
    %v208 = vcvt.s32.f32 %v204
    %v209 = vcvt.s32.f32 %v205
    %v210 = vmul.f32 %v206, 1.1920929e-07
    %v211 = vmul.f32 %v207, 1.1920929e-07
    %v212 = vmul.f32 %v208, 1.1920929e-07
    %v213 = vmul.f32 %v209, 1.1920929e-07
    %v214 = vadd.f32 %v193, %v210
    %v215 = vadd.f32 %v194, %v211
    %v216 = vadd.f32 %v195, %v212
    %v217 = vadd.f32 %v196, %v213
    %s218 = scalar_lea.vmem %s0, 320
    %v219 = vld [vmem:[%s218] sm:$0xff]
    %v220 = vld [vmem:[%s218 + $0x8] sm:$0xff]
    %v221 = vld [vmem:[%s218 + $0x10] sm:$0xff]
    %v222 = vld [vmem:[%s218 + $0x18] sm:$0xff]
    %v223 = vand.u32 %v219, 8388607
    %v224 = vand.u32 %v220, 8388607
    %v225 = vand.u32 %v221, 8388607
    %v226 = vand.u32 %v222, 8388607
    %v227 = vcvt.s32.f32 %v223
    %v228 = vcvt.s32.f32 %v224
    %v229 = vcvt.s32.f32 %v225
    %v230 = vcvt.s32.f32 %v226
    %v231 = vmul.f32 %v227, 1.1920929e-07
    %v232 = vmul.f32 %v228, 1.1920929e-07
    %v233 = vmul.f32 %v229, 1.1920929e-07
    %v234 = vmul.f32 %v230, 1.1920929e-07
    %v235 = vadd.f32 %v214, %v231
    %v236 = vadd.f32 %v215, %v232
    %v237 = vadd.f32 %v216, %v233
    %v238 = vadd.f32 %v217, %v234
    %s239 = scalar_lea.vmem %s0, 352
    %v240 = vld [vmem:[%s239] sm:$0xff]
    %v241 = vld [vmem:[%s239 + $0x8] sm:$0xff]
    %v242 = vld [vmem:[%s239 + $0x10] sm:$0xff]
    %v243 = vld [vmem:[%s239 + $0x18] sm:$0xff]
    %v244 = vand.u32 %v240, 8388607
    %v245 = vand.u32 %v241, 8388607
    %v246 = vand.u32 %v242, 8388607
    %v247 = vand.u32 %v243, 8388607
    %v248 = vcvt.s32.f32 %v244
    %v249 = vcvt.s32.f32 %v245
    %v250 = vcvt.s32.f32 %v246
    %v251 = vcvt.s32.f32 %v247
    %v252 = vmul.f32 %v248, 1.1920929e-07
    %v253 = vmul.f32 %v249, 1.1920929e-07
    %v254 = vmul.f32 %v250, 1.1920929e-07
    %v255 = vmul.f32 %v251, 1.1920929e-07
    %v256 = vadd.f32 %v235, %v252
    %v257 = vadd.f32 %v236, %v253
    %v258 = vadd.f32 %v237, %v254
    %v259 = vadd.f32 %v238, %v255
    %v260 = vsub.f32 %v256, 6.0
    %v261 = vsub.f32 %v257, 6.0
    %v262 = vsub.f32 %v258, 6.0
    %v263 = vsub.f32 %v259, 6.0
    %264 = vst [vmem:[#allocation2] sm:$0xff] %v260
    %265 = vst [vmem:[#allocation2 + $0x8] sm:$0xff] %v261
    %266 = vst [vmem:[#allocation2 + $0x10] sm:$0xff] %v262
    %267 = vst [vmem:[#allocation2 + $0x18] sm:$0xff] %v263
    // Predicated region
    $region6: #{_pallas_randn.1} parent=1 // pred_check
      _
    $region7: #{_pallas_randn.1} parent=1 // pred_check_branch
      %269 = sbr.rel (0) target = $region9
    $region8: #{_pallas_randn.1} parent=1 // pred_region
      %s271 = ssub.s32 512, 512
      %272 = vsyncadd [#allocation3], %s271
      %s273 = sshll.u32 [#allocation2], 4
      %s274 = int_to_ptr.vmem [resolvable:$true] %s273
      %279 = dma.vmem_to_hbm [thread:$0]  %s274, 512, %s1, [#allocation3], 256, 256, 16
    $region9: #{_pallas_randn.1} parent=1 // pred_fallthru
      _
    // Predicated region
    $region10: #{_pallas_randn.1} parent=1 // pred_check
      _
    $region11: #{_pallas_randn.1} parent=1 // pred_check_branch
      %281 = sbr.rel (0) target = $region13
    $region12: #{_pallas_randn.1} parent=1 // pred_region
      %282 = dma.done [#allocation3], 512
    $region13: #{_pallas_randn.1} parent=1 // pred_fallthru
      _
    %283 = vsyncpa [#allocation3], 1

</llo_original>
